<compile_context>
chip_gen: v6e
topology: v6e:2x2x1
jax: 0.10.0
libtpu: 0.0.40
codegen_flags: <defaults>
</compile_context>

<pallas_src>
import functools

import jax
import jax.numpy as jnp
from jax import lax
from jax.experimental import pallas as pl
from jax.experimental.pallas import tpu as pltpu

_EPS = 1e-5  # torch.nn.functional.layer_norm default eps


# ---------------------------------------------------------------------------
# Kernel
# ---------------------------------------------------------------------------
def _make_layernorm_kernel(num_chunks: int, chunk_rows: int):
    """Build a kernel processing a (num_chunks*chunk_rows, dim) tile."""

    def _normalize(x, g, b, out_dtype):
        xf = x.astype(jnp.float32)
        mean = jnp.mean(xf, axis=-1, keepdims=True)
        centered = xf - mean
        var = jnp.mean(centered * centered, axis=-1, keepdims=True)
        inv = lax.rsqrt(var + _EPS)  # EUP slot -- effectively free
        return (centered * inv * g + b).astype(out_dtype)

    def kernel(x_ref, g_ref, b_ref, o_ref):
        # Hoist the (1, dim) scale/shift loads out of the chunk loop.
        g = g_ref[...].astype(jnp.float32)
        b = b_ref[...].astype(jnp.float32)

        if num_chunks == 1:
            o_ref[...] = _normalize(x_ref[...], g, b, o_ref.dtype)
        else:
            # Chunked sweep over the tile so the f32 upcast / centered
            # temporaries are only chunk-sized, not full-tile-sized.
            def body(c, carry):
                r0 = pl.multiple_of(c * chunk_rows, chunk_rows)
                o_ref[pl.ds(r0, chunk_rows), :] = _normalize(
                    x_ref[pl.ds(r0, chunk_rows), :], g, b, o_ref.dtype)
                return carry

            lax.fori_loop(0, num_chunks, body, 0, unroll=num_chunks <= 4)

    return kernel


# ---------------------------------------------------------------------------
# Tiling heuristics
# ---------------------------------------------------------------------------
def _sublane_multiple(dtype) -> int:
    # f32 -> 8, bf16/f16 -> 16, int8/fp8 -> 32 (sub-32-bit dtypes pack sublanes)
    itemsize = jnp.dtype(dtype).itemsize
    return max(8, 32 // max(1, itemsize))


@functools.lru_cache(maxsize=1)
def _vmem_capacity_bytes() -> int:
    """Physical VMEM per TensorCore; conservative fallback = v7x's 64 MiB."""
    try:
        return int(pltpu.get_tpu_info().vmem_capacity_bytes)
    except Exception:  # no TPU info available -> assume the smallest part
        return 64 * 1024 * 1024


def _pick_tiling(rows: int, dim: int, dtype):
    """Return (tile_rows, chunk_rows, vmem_limit_bytes).

    tile_rows  : rows per grid step (HBM DMA tile); multiple of chunk_rows.
    chunk_rows : rows processed per in-kernel iteration (bounds f32 scratch).
    """
    itemsize = jnp.dtype(dtype).itemsize
    sub = _sublane_multiple(dtype)

    vmem_cap = _vmem_capacity_bytes()
    # Scoped VMEM limit: ~3/4 of physical (96 MiB on 128 MiB parts, 48 MiB on
    # v7x's 64 MiB), leaving headroom for compiler-internal scratch.
    vmem_limit = min((3 * vmem_cap) // 4, 100 * 1024 * 1024)

    # In-kernel row chunk: keep each f32 temporary (~x upcast, centered) to
    # ~1 MiB so VMEM is spent on the double-buffered I/O tiles instead.
    chunk_rows = ((1024 * 1024) // (dim * 4)) // sub * sub
    chunk_rows = max(sub, min(chunk_rows, 1024))

    # Target ~16 MiB of HBM traffic per grid step (in + out, native dtype) to
    # amortize the ~0.35 us per-step overhead even at v7x's 3.2 TB/s.
    io_rows = (16 * 1024 * 1024) // (2 * dim * itemsize)

    # VMEM: 2x double-buffered input + output tiles, ~3 chunk-sized f32
    # temporaries, plus slack for params / compiler scratch.
    temps = 3 * chunk_rows * dim * 4
    slack = 4 * 1024 * 1024
    vmem_rows = max(0, vmem_limit - temps - slack) // (4 * dim * itemsize)

    tile_rows = min(io_rows, vmem_rows)
    tile_rows = max(chunk_rows, (tile_rows // chunk_rows) * chunk_rows)
    # NOTE: no tail-waste shrink loop -- padding waste is confined to a single
    # masked tail block; shrinking the tile taxes every step instead.

    if tile_rows >= rows:
        if rows * dim * itemsize <= 2 * 1024 * 1024:
            # Tiny input: one block covering everything, no chunk loop (the
            # f32 working set is small).  Full-extent block dims are always
            # legal regardless of (8, 128) alignment.
            return rows, rows, vmem_limit
        # Mid-size input that would fit one block: split into >=2 "parallel"
        # blocks so both v7x TensorCores participate (near-free on 1-TC chips).
        half = -(-rows // 2)
        if rows > chunk_rows:
            tile_rows = -(-half // chunk_rows) * chunk_rows
        else:
            tile_rows = -(-half // sub) * sub
            chunk_rows = tile_rows

    return tile_rows, chunk_rows, vmem_limit


# ---------------------------------------------------------------------------
# Wrapper
# ---------------------------------------------------------------------------
@jax.jit
def layer_norm(x, gamma, beta):
    """LayerNorm over the last axis, matching F.layer_norm(x, x.shape[-1:], g, b)."""
    orig_shape = x.shape
    dim = orig_shape[-1]
    rows = 1
    for s in orig_shape[:-1]:
        rows *= s

    x2 = x.reshape(rows, dim)
    g2 = gamma.reshape(1, dim)
    b2 = beta.reshape(1, dim)

    tile_rows, chunk_rows, vmem_limit = _pick_tiling(rows, dim, x.dtype)
    assert tile_rows % chunk_rows == 0
    num_chunks = tile_rows // chunk_rows
    grid_rows = pl.cdiv(rows, tile_rows)  # ragged tail handled by masking

    itemsize = jnp.dtype(x.dtype).itemsize
    cost = pl.CostEstimate(
        flops=8 * rows * dim,
        transcendentals=rows,  # one rsqrt per row
        bytes_accessed=2 * rows * dim * itemsize
        + 2 * dim * jnp.dtype(gamma.dtype).itemsize,
    )

    # TODO(synk): for dim < 128 the stores are lane-sparse (masked vst);
    # folding rows into the lane axis would need a segmented per-row reduction
    # and is only worth it if such narrow dims matter in production.

    out = pl.pallas_call(
        _make_layernorm_kernel(num_chunks, chunk_rows),
        out_shape=jax.ShapeDtypeStruct((rows, dim), x.dtype),
        grid_spec=pltpu.PrefetchScalarGridSpec(
            num_scalar_prefetch=0,
            grid=(grid_rows,),
            in_specs=[
                pl.BlockSpec((tile_rows, dim), lambda i: (i, 0)),
                pl.BlockSpec((1, dim), lambda i: (0, 0)),
                pl.BlockSpec((1, dim), lambda i: (0, 0)),
            ],
            out_specs=pl.BlockSpec((tile_rows, dim), lambda i: (i, 0)),
        ),
        compiler_params=pltpu.CompilerParams(
            # Row axis is embarrassingly parallel -> shards across v7x's 2 TCs.
            dimension_semantics=("parallel",),
            vmem_limit_bytes=vmem_limit,
        ),
        cost_estimate=cost,
    )(x2, g2, b2)

    return out.reshape(orig_shape)


# ---------------------------------------------------------------------------
# Reference + tests
# ---------------------------------------------------------------------------
def _reference_layer_norm(x, gamma, beta):
    xf = x.astype(jnp.float32)
    mean = jnp.mean(xf, axis=-1, keepdims=True)
    var = jnp.mean((xf - mean) ** 2, axis=-1, keepdims=True)
    y = (xf - mean) / jnp.sqrt(var + _EPS)
    return (y * gamma.astype(jnp.float32) + beta.astype(jnp.float32)).astype(x.dtype)


if __name__ == "__main__":
    key = jax.random.PRNGKey(0)

    # Primary test: module-consistent small shape (batch, seq, dim), f32.
    batch, seq, dim = 2, 8, 32
    x = jax.random.normal(key, (batch, seq, dim), dtype=jnp.float32)
    gamma = jnp.ones((dim,), dtype=jnp.float32)   # nn.Parameter(torch.ones(dim))
    beta = jnp.zeros((dim,), dtype=jnp.float32)   # registered buffer zeros(dim)

    out = jax.block_until_ready(layer_norm(x, gamma, beta))
    ref = _reference_layer_norm(x, gamma, beta)
    assert out.shape == x.shape
    assert jnp.allclose(out, ref, atol=1e-5, rtol=1e-5), "f32 mismatch vs reference"

    # Secondary test: bf16 input with a lane-dense dim (checks dtype-aware tiling).
    key2 = jax.random.PRNGKey(1)
    xb = jax.random.normal(key2, (2, 8, 128), dtype=jnp.bfloat16)
    gb = jnp.ones((128,), dtype=jnp.bfloat16)
    bb = jnp.zeros((128,), dtype=jnp.bfloat16)
    outb = jax.block_until_ready(layer_norm(xb, gb, bb))
    refb = _reference_layer_norm(xb, gb, bb)
    assert outb.shape == xb.shape
    assert jnp.allclose(outb.astype(jnp.float32), refb.astype(jnp.float32),
                        atol=2e-2, rtol=2e-2), "bf16 mismatch vs reference"

    # Tertiary test: exercises the multi-block "parallel" grid and the
    # in-kernel chunked loop (rows=2048, dim=512 -> 2 blocks x 2 chunks).
    key3 = jax.random.PRNGKey(2)
    xl = jax.random.normal(key3, (2, 1024, 512), dtype=jnp.float32)
    gl = jax.random.normal(jax.random.PRNGKey(3), (512,), dtype=jnp.float32)
    bl = jax.random.normal(jax.random.PRNGKey(4), (512,), dtype=jnp.float32)
    outl = jax.block_until_ready(layer_norm(xl, gl, bl))
    refl = _reference_layer_norm(xl, gl, bl)
    assert outl.shape == xl.shape
    assert jnp.allclose(outl, refl, atol=1e-4, rtol=1e-4), "tiled-path mismatch"

    print("KERNEL_OK")
</pallas_src>

<mosaic_0001>
module attributes {stable_mosaic.version = 11 : i64} {
  func.func @kernel(%arg0: i32, %arg1: memref<16x32xf32, #tpu.memory_space<vmem>>, %arg2: memref<1x32xf32, #tpu.memory_space<vmem>>, %arg3: memref<1x32xf32, #tpu.memory_space<vmem>>, %arg4: memref<16x32xf32, #tpu.memory_space<vmem>>) attributes {dimension_semantics = [#tpu.dimension_semantics<parallel>], iteration_bounds = array<i64: 1>, scalar_prefetch = 0 : i64, scratch_operands = 0 : i64, tpu.core_type = #tpu.core_type<tc>, window_params = [{transform_indices = @transform_0, window_bounds = array<i64: 16, 32>}, {pipeline_mode = #tpu.pipeline_mode<synchronous>, transform_indices = @transform_1, window_bounds = array<i64: 1, 32>}, {pipeline_mode = #tpu.pipeline_mode<synchronous>, transform_indices = @transform_2, window_bounds = array<i64: 1, 32>}, {transform_indices = @transform_3, window_bounds = array<i64: 16, 32>}]} {
    %c0 = arith.constant 0 : index
    %c0_0 = arith.constant 0 : index
    %0 = vector.load %arg2[%c0, %c0_0] : memref<1x32xf32, #tpu.memory_space<vmem>>, vector<1x32xf32>
    %c0_1 = arith.constant 0 : index
    %c0_2 = arith.constant 0 : index
    %1 = vector.load %arg3[%c0_1, %c0_2] : memref<1x32xf32, #tpu.memory_space<vmem>>, vector<1x32xf32>
    %c0_3 = arith.constant 0 : index
    %c0_4 = arith.constant 0 : index
    %2 = vector.load %arg1[%c0_3, %c0_4] : memref<16x32xf32, #tpu.memory_space<vmem>>, vector<16x32xf32>
    %cst = arith.constant dense<0.000000e+00> : vector<16xf32>
    %3 = vector.multi_reduction <add>, %2, %cst [1] : vector<16x32xf32> to vector<16xf32>
    %4 = vector.shape_cast %3 : vector<16xf32> to vector<16x1xf32>
    %cst_5 = arith.constant 3.200000e+01 : f32
    %5 = vector.broadcast %cst_5 : f32 to vector<16x1xf32>
    %6 = arith.divf %4, %5 : vector<16x1xf32>
    %7 = vector.broadcast %6 : vector<16x1xf32> to vector<16x32xf32>
    %8 = arith.subf %2, %7 : vector<16x32xf32>
    %9 = arith.mulf %8, %8 : vector<16x32xf32>
    %cst_6 = arith.constant dense<0.000000e+00> : vector<16xf32>
    %10 = vector.multi_reduction <add>, %9, %cst_6 [1] : vector<16x32xf32> to vector<16xf32>
    %11 = vector.shape_cast %10 : vector<16xf32> to vector<16x1xf32>
    %cst_7 = arith.constant 3.200000e+01 : f32
    %12 = vector.broadcast %cst_7 : f32 to vector<16x1xf32>
    %13 = arith.divf %11, %12 : vector<16x1xf32>
    %cst_8 = arith.constant 9.99999974E-6 : f32
    %14 = vector.broadcast %cst_8 : f32 to vector<16x1xf32>
    %15 = arith.addf %13, %14 : vector<16x1xf32>
    %16 = math.rsqrt %15 : vector<16x1xf32>
    %17 = vector.broadcast %16 : vector<16x1xf32> to vector<16x32xf32>
    %18 = arith.mulf %8, %17 : vector<16x32xf32>
    %19 = vector.broadcast %0 : vector<1x32xf32> to vector<16x32xf32>
    %20 = arith.mulf %18, %19 : vector<16x32xf32>
    %21 = vector.broadcast %1 : vector<1x32xf32> to vector<16x32xf32>
    %22 = arith.addf %20, %21 : vector<16x32xf32>
    %c0_9 = arith.constant 0 : index
    %c0_10 = arith.constant 0 : index
    %23 = vector.load %arg4[%c0_9, %c0_10] : memref<16x32xf32, #tpu.memory_space<vmem>>, vector<16x32xf32>
    tpu.vector_store %arg4[%c0_9, %c0_10], %22 {strides = array<i32>} : memref<16x32xf32, #tpu.memory_space<vmem>>, vector<16x32xf32>,
    return
  }
  func.func @transform_0(%arg0: i32) -> (i32, i32) {
    %c0_i32 = arith.constant 0 : i32
    %c0_i32_0 = arith.constant 0 : i32
    return %arg0, %c0_i32 : i32, i32
  }
  func.func @transform_1(%arg0: i32) -> (i32, i32) {
    %c0_i32 = arith.constant 0 : i32
    %c0_i32_0 = arith.constant 0 : i32
    %c0_i32_1 = arith.constant 0 : i32
    return %c0_i32, %c0_i32_0 : i32, i32
  }
  func.func @transform_2(%arg0: i32) -> (i32, i32) {
    %c0_i32 = arith.constant 0 : i32
    %c0_i32_0 = arith.constant 0 : i32
    %c0_i32_1 = arith.constant 0 : i32
    return %c0_i32, %c0_i32_0 : i32, i32
  }
  func.func @transform_3(%arg0: i32) -> (i32, i32) {
    %c0_i32 = arith.constant 0 : i32
    %c0_i32_0 = arith.constant 0 : i32
    return %arg0, %c0_i32 : i32, i32
  }
}

</mosaic_0001>

<llo_original>
// kernel: layer_norm.1
$region0: #{layer_norm.1}
  #allocation0 [shape = 'u32[]', space=smem, size = 0x4, offset = 0x4, fixed_abs, tag = 'smem constant byte address 0x4 - core index']
  #allocation1 [shape = 'u32[144,128]{1,0:T(1,128)}', space=vmem, size = 0x12000, scoped, tag = 'internal scratch']
  %s0 = inlined_call_operand.hbm [shape: f32[16,32], index: 0, kind: input, shape index: {}]
  %s1 = inlined_call_operand.vmem [shape: f32[1,32], index: 1, kind: input, shape index: {}]
  %s2 = inlined_call_operand.vmem [shape: f32[1,32], index: 2, kind: input, shape index: {}]
  %s3 = inlined_call_operand.hbm [shape: f32[16,32], index: 3, kind: output, shape index: {}]
  %s4 = sld [smem:[#allocation0]]
  $region26: #{layer_norm.1} parent=0
    _
  %s6 = ssub.s32 1, %s4
  %s7 = scalar_select 0, %s6, %s4
  $region1: #{layer_norm.1} parent=0
    #allocation2 [shape = 'u8[8192]{0}', space=vmem, size = 0x2000, scoped, tag = 'input window, operand 0, single buffered']
    #allocation3 [shape = 's32[1]{0}', space=sflag, size = 0x4, scoped, tag = 'scoped memory for layer_norm.1']
    #allocation4 [shape = 's32[1]{0}', space=sflag, size = 0x4, scoped, tag = 'scoped memory for layer_norm.1']
    #allocation5 [shape = 'u8[8192]{0}', space=vmem, size = 0x2000, scoped, tag = 'output window, operand 0, single buffered']
    %8 = vsyncpa [#allocation3], 0
    %9 = vsyncpa [#allocation4], 0
    // Predicated region
    $region2: #{layer_norm.1} parent=1 // pred_check
      _
    $region3: #{layer_norm.1} parent=1 // pred_check_branch
      %11 = sbr.rel (0) target = $region5
    $region4: #{layer_norm.1} parent=1 // pred_region
      %s13 = ssub.s32 256, 256
      %14 = vsyncadd [#allocation3], %s13
      %s15 = sshll.u32 [#allocation2], 4
      %s16 = int_to_ptr.vmem [resolvable:$true] %s15
      %21 = dma.hbm_to_vmem [thread:$0]  %s0, 256, %s16, [#allocation3], 128, 128, 8
    $region5: #{layer_norm.1} parent=1 // pred_fallthru
      _
    // Predicated region
    $region6: #{layer_norm.1} parent=1 // pred_check
      _
    $region7: #{layer_norm.1} parent=1 // pred_check_branch
      %23 = sbr.rel (0) target = $region9
    $region8: #{layer_norm.1} parent=1 // pred_region
      _
    $region9: #{layer_norm.1} parent=1 // pred_fallthru
      _
    // Predicated region
    $region10: #{layer_norm.1} parent=1 // pred_check
      _
    $region11: #{layer_norm.1} parent=1 // pred_check_branch
      %25 = sbr.rel (0) target = $region13
    $region12: #{layer_norm.1} parent=1 // pred_region
      _
    $region13: #{layer_norm.1} parent=1 // pred_fallthru
      _
    // Predicated region
    $region14: #{layer_norm.1} parent=1 // pred_check
      _
    $region15: #{layer_norm.1} parent=1 // pred_check_branch
      %27 = sbr.rel (0) target = $region17
    $region16: #{layer_norm.1} parent=1 // pred_region
      %28 = dma.done [#allocation3], 256
    $region17: #{layer_norm.1} parent=1 // pred_fallthru
      _
    %v29 = vld [vmem:[%s1] sm:$0x1]
    %v30 = vld [vmem:[%s2] sm:$0x1]
    %v31 = vld [vmem:[#allocation2] sm:$0xff]
    %v32 = vld [vmem:[#allocation2 + $0x8] sm:$0xff]
    %vm33 = vcmask 261120
    %v34 = vsel %vm33, %v31, 0.0
    %35 = vadd.xlane.f32.xlu0 %v34
    %v36 = vpop.xlane.xlu0 %35
    %v37 = vsel %vm33, %v32, 0.0
    %38 = vadd.xlane.f32.xlu0 %v37
    %v39 = vpop.xlane.xlu0 %38
    %v40 = vrcp.pop 32.0
    %v41 = vmul.f32 %v36, %v40
    %v42 = vmul.f32 %v39, %v40
    %v43 = vsub.f32 %v31, %v41
    %v44 = vsub.f32 %v32, %v42
    %v45 = vmul.f32 %v43, %v43
    %v46 = vmul.f32 %v44, %v44
    %v47 = vsel %vm33, %v45, 0.0
    %48 = vadd.xlane.f32.xlu0 %v47
    %v49 = vpop.xlane.xlu0 %48
    %v50 = vsel %vm33, %v46, 0.0
    %51 = vadd.xlane.f32.xlu0 %v50
    %v52 = vpop.xlane.xlu0 %51
    %v53 = vmul.f32 %v49, %v40
    %v54 = vmul.f32 %v52, %v40
    %v55 = vadd.f32 %v53, 1e-05
    %v56 = vadd.f32 %v54, 1e-05
    %v57 = vrsqrt.pop %v55
    %v58 = vrsqrt.pop %v56
    %v59 = vmul.f32 %v43, %v57
    %v60 = vmul.f32 %v44, %v58
    %v62 = vlaneseq
    %v63 = vshrl.u32 %v62, 7
    %v64 = vsub.s32 0, %v63
    %v65 = vrot.slane %v29, %v64
    %v67 = vmul.f32 %v59, %v65
    %v68 = vmul.f32 %v60, %v65
    %v70 = vlaneseq
    %v71 = vshrl.u32 %v70, 7
    %v72 = vsub.s32 0, %v71
    %v73 = vrot.slane %v30, %v72
    %v75 = vadd.f32 %v67, %v73
    %v76 = vadd.f32 %v68, %v73
    %77 = vst.msk [vmem:[#allocation5] sm:$0xff] %vm33, %v75
    %78 = vst.msk [vmem:[#allocation5 + $0x8] sm:$0xff] %vm33, %v76
    // Predicated region
    $region18: #{layer_norm.1} parent=1 // pred_check
      _
    $region19: #{layer_norm.1} parent=1 // pred_check_branch
      %80 = sbr.rel (0) target = $region21
    $region20: #{layer_norm.1} parent=1 // pred_region
      %s82 = ssub.s32 256, 256
      %83 = vsyncadd [#allocation4], %s82
      %s84 = sshll.u32 [#allocation5], 4
      %s85 = int_to_ptr.vmem [resolvable:$true] %s84
      %90 = dma.vmem_to_hbm [thread:$0]  %s85, 256, %s3, [#allocation4], 128, 128, 8
    $region21: #{layer_norm.1} parent=1 // pred_fallthru
      _
    // Predicated region
    $region22: #{layer_norm.1} parent=1 // pred_check
      _
    $region23: #{layer_norm.1} parent=1 // pred_check_branch
      %92 = sbr.rel (0) target = $region25
    $region24: #{layer_norm.1} parent=1 // pred_region
      %93 = dma.done [#allocation4], 256
    $region25: #{layer_norm.1} parent=1 // pred_fallthru
      _
    %94 = vsyncpa [#allocation3], 1
    %95 = vsyncpa [#allocation4], 1

</llo_original>
